<compile_context>
chip_gen: v6e
topology: v6e:2x2x1
jax: 0.10.0
libtpu: 0.0.40
codegen_flags: <defaults>
</compile_context>

<pallas_src>
import math

import jax
import jax.numpy as jnp
from jax.experimental import pallas as pl
from jax.experimental.pallas import tpu as pltpu


# ----------------------------------------------------------------------------
# Kernel
# ----------------------------------------------------------------------------
def _add_pe_kernel(x_ref, pe_ref, o_ref):
    # x_ref/o_ref: (rows_x, tL) lane-dense tiles; pe_ref: (rows_pe, tL) with
    # rows_pe dividing rows_x.  Replicate pe over the batch copies on the
    # sublane axis (broadcast when rows_pe == 1) and add on the VPU; any dtype
    # convert (e.g. f32 pe + bf16 x) happens for free in-kernel on the store.
    x = x_ref[...]
    pe = pe_ref[...]
    reps = x.shape[0] // pe.shape[0]          # static at trace time
    if reps > 1:
        pe = jnp.tile(pe, (reps, 1))
    o_ref[...] = (x + pe).astype(o_ref.dtype)


# ----------------------------------------------------------------------------
# pe buffer init (matches the PyTorch __init__, with an odd-d_model guard the
# original lacks)
# ----------------------------------------------------------------------------
def make_positional_encoding(d_model: int, max_len: int = 512,
                             dtype=jnp.float32) -> jnp.ndarray:
    position = jnp.arange(0, max_len, dtype=jnp.float32)[:, None]          # (max_len, 1)
    div_term = jnp.exp(
        jnp.arange(0, d_model, 2, dtype=jnp.float32) * (-math.log(10000.0) / d_model)
    )                                                                       # (ceil(d/2),)
    angles = position * div_term                                            # (max_len, ceil(d/2))
    pe = jnp.zeros((max_len, d_model), dtype=jnp.float32)
    pe = pe.at[:, 0::2].set(jnp.sin(angles))
    pe = pe.at[:, 1::2].set(jnp.cos(angles[:, : d_model // 2]))
    # Cast once at init (model dtype), not per forward call.
    return pe[None, :, :].astype(dtype)                                     # (1, max_len, d_model)


# ----------------------------------------------------------------------------
# Layout / tiling helpers
# ----------------------------------------------------------------------------
def _round_up(x: int, m: int) -> int:
    return -(-x // m) * m


def _sublane_quantum(dtype) -> int:
    # 8 sublanes for 4-byte, 16 for 2-byte, 32 for 1-byte dtypes.
    return max(8, 32 // jnp.dtype(dtype).itemsize)


def _divisors(n: int):
    ds, i = [], 1
    while i * i <= n:
        if n % i == 0:
            ds.append(i)
            if i != n // i:
                ds.append(n // i)
        i += 1
    return sorted(ds)


def _pick_fold(B: int, S: int, D: int, q: int) -> int:
    """Pick Sb (how much of S to fold onto the sublane axis) so the
    (B*Sb, (S/Sb)*D) view maximizes vreg occupancy when B < sublane quantum."""
    if B >= q or S <= 1:
        return 1
    total = B * S * D
    best_sb, best_key = 1, None
    for sb in _divisors(S):
        rows = B * sb
        lanes = (S // sb) * D
        padded = _round_up(rows, q) * _round_up(lanes, 128)
        occ = total / padded                       # useful / padded vreg elems
        sub_occ = rows / _round_up(rows, q)        # sublane occupancy
        key = (occ, sub_occ, -sb)                  # prefer smaller fold on ties
        if best_key is None or key > best_key:
            best_key, best_sb = key, sb
    return best_sb


def _largest_aligned_divisor(L: int, cap: int):
    """Largest multiple-of-128 divisor of L that is <= cap, or None."""
    if L % 128 != 0 or cap < 128:
        return None
    n, best, i = L // 128, None, 1
    while i * i <= n:
        if n % i == 0:
            for d in (i, n // i):
                t = d * 128
                if t <= cap and (best is None or t > best):
                    best = t
        i += 1
    return best


def _tpu_tuning():
    """(per-tile byte budget, vmem_limit_bytes) per TPU generation."""
    kind = ""
    try:
        kind = jax.devices()[0].device_kind.lower()
    except Exception:
        pass
    if "v6" in kind:                    # v6e: 128 MiB physical VMEM, 1.4 TB/s
        return 12 << 20, 80 << 20
    if "v7" in kind or "7x" in kind:    # v7x: 64 MiB physical VMEM, 3.2 TB/s
        return 8 << 20, 48 << 20
    # v5e (16 MiB default scoped -> override to 32), v5p/v4/unknown: safe.
    return 4 << 20, 32 << 20


def _pick_lane_tile(L, rows_x, rows_pe, x_dtype, pe_dtype,
                    tile_budget, vmem_limit) -> int:
    """Lane-tile width: multiple of 128 (or the full L), sized so the real
    resident set (2 x-in + 2 out + 2 pe buffers, sublane-padded) fits the
    scoped VMEM limit and a single x tile stays near the per-gen budget."""
    if L <= 128:
        return L

    qx, qp = _sublane_quantum(x_dtype), _sublane_quantum(pe_dtype)
    xb = jnp.dtype(x_dtype).itemsize
    pb = jnp.dtype(pe_dtype).itemsize
    rows_x_pad = _round_up(rows_x, qx)
    rows_pe_pad = _round_up(rows_pe, qp)

    # Bytes resident in VMEM per lane of tile width (double-buffered x, out, pe).
    bytes_per_lane = 4 * rows_x_pad * xb + 2 * rows_pe_pad * pb
    headroom = 8 << 20                              # compiler internal scratch
    cap_resident = max(vmem_limit - headroom, 1 << 20) // bytes_per_lane
    cap_tile = tile_budget // (rows_x_pad * xb)
    cap = max(128, (min(cap_resident, cap_tile) // 128) * 128)

    # Prefer a tile width that divides L exactly (no masked tail block).
    tl = _largest_aligned_divisor(L, cap)
    if tl is None:
        tl = min(cap, L) if cap < L else L          # mult-of-128 or full dim

    # Give the grid >= 2 steps for large inputs so v7x's two TensorCores both
    # get work (and pipelining has something to overlap); skip for tiny inputs
    # where the fixed ~0.35us/step overhead would dominate.
    if tl >= L and L % 256 == 0:
        single_tile_bytes = rows_x_pad * xb * L
        if single_tile_bytes >= (2 << 20):
            tl = L // 2
    return tl


# ----------------------------------------------------------------------------
# Forward
# ----------------------------------------------------------------------------
def positional_encoding_forward(x: jnp.ndarray, pe: jnp.ndarray,
                                *, donate_x: bool = False) -> jnp.ndarray:
    """x: [B, S, D]; pe: [1, max_len, D].  Returns x + pe[:, :S, :].

    donate_x=True aliases x's (flattened) buffer as the output — only enable
    when the caller does not read x afterwards (e.g. inside a fused jit)."""
    B, S, D = x.shape
    max_len = pe.shape[1]
    if S > max_len:
        raise ValueError(f"sequence length {S} exceeds max_len {max_len}")

    # Sublane-aware lane-dense layout.
    q = _sublane_quantum(x.dtype)
    sb = _pick_fold(B, S, D, q)          # fold factor of S onto sublane axis
    rows_x = B * sb
    rows_pe = sb
    L = (S // sb) * D

    x_flat = x.reshape(rows_x, L)
    # No dtype cast here: pe stays in its stored dtype; the kernel converts.
    pe_flat = pe[0, :S, :].reshape(rows_pe, L)

    tile_budget, vmem_limit = _tpu_tuning()
    tl = _pick_lane_tile(L, rows_x, rows_pe, x.dtype, pe.dtype,
                         tile_budget, vmem_limit)
    num_tiles = pl.cdiv(L, tl)

    extra = {"input_output_aliases": {0: 0}} if donate_x else {}

    out_flat = pl.pallas_call(
        _add_pe_kernel,
        out_shape=jax.ShapeDtypeStruct((rows_x, L), x.dtype),
        grid_spec=pltpu.PrefetchScalarGridSpec(
            num_scalar_prefetch=0,
            grid=(num_tiles,),
            in_specs=[
                pl.BlockSpec((rows_x, tl), lambda t: (0, t)),   # full rows, one lane tile of x
                pl.BlockSpec((rows_pe, tl), lambda t: (0, t)),  # matching pe tile
            ],
            out_specs=pl.BlockSpec((rows_x, tl), lambda t: (0, t)),
        ),
        compiler_params=pltpu.CompilerParams(
            dimension_semantics=("parallel",),   # shard lane tiles across TCs on v7x
            vmem_limit_bytes=vmem_limit,         # per-generation (overrides v5e 16 MiB default)
        ),
        **extra,
    )(x_flat, pe_flat)

    return out_flat.reshape(B, S, D)


# ----------------------------------------------------------------------------
if __name__ == "__main__":
    B, S, D = 2, 8, 32
    max_len = 512

    key = jax.random.PRNGKey(0)
    x = jax.random.normal(key, (B, S, D), dtype=jnp.float32)

    pe = make_positional_encoding(D, max_len=max_len)

    ref = x + pe[:, :S, :]

    out = positional_encoding_forward(x, pe)
    out = jax.block_until_ready(out)

    assert out.shape == (B, S, D)
    assert jnp.allclose(out, ref, atol=1e-6), "mismatch vs reference"

    print("KERNEL_OK")
</pallas_src>

<mosaic_0001>
module attributes {stable_mosaic.version = 11 : i64} {
  func.func @_add_pe_kernel(%arg0: i32, %arg1: memref<8x64xf32, #tpu.memory_space<vmem>>, %arg2: memref<4x64xf32, #tpu.memory_space<vmem>>, %arg3: memref<8x64xf32, #tpu.memory_space<vmem>>) attributes {dimension_semantics = [#tpu.dimension_semantics<parallel>], iteration_bounds = array<i64: 1>, scalar_prefetch = 0 : i64, scratch_operands = 0 : i64, tpu.core_type = #tpu.core_type<tc>, window_params = [{transform_indices = @transform_0, window_bounds = array<i64: 8, 64>}, {transform_indices = @transform_1, window_bounds = array<i64: 4, 64>}, {transform_indices = @transform_2, window_bounds = array<i64: 8, 64>}]} {
    %c0 = arith.constant 0 : index
    %c0_0 = arith.constant 0 : index
    %0 = vector.load %arg1[%c0, %c0_0] : memref<8x64xf32, #tpu.memory_space<vmem>>, vector<8x64xf32>
    %c0_1 = arith.constant 0 : index
    %c0_2 = arith.constant 0 : index
    %1 = vector.load %arg2[%c0_1, %c0_2] : memref<4x64xf32, #tpu.memory_space<vmem>>, vector<4x64xf32>
    %2 = tpu.concatenate %1, %1 in 0 : vector<4x64xf32>, vector<4x64xf32> -> vector<8x64xf32>
    %3 = arith.addf %0, %2 : vector<8x64xf32>
    %c0_3 = arith.constant 0 : index
    %c0_4 = arith.constant 0 : index
    %4 = vector.load %arg3[%c0_3, %c0_4] : memref<8x64xf32, #tpu.memory_space<vmem>>, vector<8x64xf32>
    tpu.vector_store %arg3[%c0_3, %c0_4], %3 {strides = array<i32>} : memref<8x64xf32, #tpu.memory_space<vmem>>, vector<8x64xf32>,
    return
  }
  func.func @transform_0(%arg0: i32) -> (i32, i32) {
    %c0_i32 = arith.constant 0 : i32
    %c0_i32_0 = arith.constant 0 : i32
    return %c0_i32, %arg0 : i32, i32
  }
  func.func @transform_1(%arg0: i32) -> (i32, i32) {
    %c0_i32 = arith.constant 0 : i32
    %c0_i32_0 = arith.constant 0 : i32
    return %c0_i32, %arg0 : i32, i32
  }
  func.func @transform_2(%arg0: i32) -> (i32, i32) {
    %c0_i32 = arith.constant 0 : i32
    %c0_i32_0 = arith.constant 0 : i32
    return %c0_i32, %arg0 : i32, i32
  }
}

</mosaic_0001>

<llo_original>
// kernel: tpu_custom_call.1
$region0: #{tpu_custom_call.1}
  #allocation0 [shape = 'u32[]', space=smem, size = 0x4, offset = 0x4, fixed_abs, tag = 'smem constant byte address 0x4 - core index']
  #allocation1 [shape = 'u32[144,128]{1,0:T(1,128)}', space=vmem, size = 0x12000, scoped, tag = 'internal scratch']
  %s0 = inlined_call_operand.hbm [shape: f32[8,64], index: 0, kind: input, shape index: {}]
  %s1 = inlined_call_operand.hbm [shape: f32[4,64], index: 1, kind: input, shape index: {}]
  %s2 = inlined_call_operand.hbm [shape: f32[8,64], index: 2, kind: output, shape index: {}]
  %s3 = sld [smem:[#allocation0]]
  $region26: #{tpu_custom_call.1} parent=0
    _
  %s5 = ssub.s32 1, %s3
  %s6 = scalar_select 0, %s5, %s3
  $region1: #{tpu_custom_call.1} parent=0
    #allocation2 [shape = 'u8[4096]{0}', space=vmem, size = 0x1000, scoped, tag = 'input window, operand 0, single buffered']
    #allocation3 [shape = 's32[1]{0}', space=sflag, size = 0x4, scoped, tag = 'scoped memory for tpu_custom_call.1']
    #allocation4 [shape = 's32[1]{0}', space=sflag, size = 0x4, scoped, tag = 'scoped memory for tpu_custom_call.1']
    #allocation5 [shape = 'u8[2048]{0}', space=vmem, size = 0x800, scoped, tag = 'input window, operand 1, single buffered']
    #allocation6 [shape = 's32[1]{0}', space=sflag, size = 0x4, scoped, tag = 'scoped memory for tpu_custom_call.1']
    #allocation7 [shape = 'u8[4096]{0}', space=vmem, size = 0x1000, scoped, tag = 'output window, operand 0, single buffered']
    %7 = vsyncpa [#allocation3], 0
    %8 = vsyncpa [#allocation6], 0
    %9 = vsyncpa [#allocation4], 0
    // Predicated region
    $region2: #{tpu_custom_call.1} parent=1 // pred_check
      _
    $region3: #{tpu_custom_call.1} parent=1 // pred_check_branch
      %11 = sbr.rel (0) target = $region5
    $region4: #{tpu_custom_call.1} parent=1 // pred_region
      %s13 = ssub.s32 128, 128
      %14 = vsyncadd [#allocation3], %s13
      %s16 = sshll.u32 [#allocation2], 4
      %s17 = int_to_ptr.vmem [resolvable:$true] %s16
      %19 = dma.hbm_to_vmem [thread:$0]  %s0, 128, %s17, [#allocation3]
    $region5: #{tpu_custom_call.1} parent=1 // pred_fallthru
      _
    // Predicated region
    $region6: #{tpu_custom_call.1} parent=1 // pred_check
      _
    $region7: #{tpu_custom_call.1} parent=1 // pred_check_branch
      %21 = sbr.rel (0) target = $region9
    $region8: #{tpu_custom_call.1} parent=1 // pred_region
      %s23 = ssub.s32 64, 64
      %24 = vsyncadd [#allocation6], %s23
      %s26 = sshll.u32 [#allocation5], 4
      %s27 = int_to_ptr.vmem [resolvable:$true] %s26
      %29 = dma.hbm_to_vmem [thread:$0]  %s1, 64, %s27, [#allocation6]
    $region9: #{tpu_custom_call.1} parent=1 // pred_fallthru
      _
    // Predicated region
    $region10: #{tpu_custom_call.1} parent=1 // pred_check
      _
    $region11: #{tpu_custom_call.1} parent=1 // pred_check_branch
      %31 = sbr.rel (0) target = $region13
    $region12: #{tpu_custom_call.1} parent=1 // pred_region
      %32 = dma.done [#allocation3], 128
    $region13: #{tpu_custom_call.1} parent=1 // pred_fallthru
      _
    // Predicated region
    $region14: #{tpu_custom_call.1} parent=1 // pred_check
      _
    $region15: #{tpu_custom_call.1} parent=1 // pred_check_branch
      %34 = sbr.rel (0) target = $region17
    $region16: #{tpu_custom_call.1} parent=1 // pred_region
      %35 = dma.done [#allocation6], 64
    $region17: #{tpu_custom_call.1} parent=1 // pred_fallthru
      _
    %v36 = vld [vmem:[#allocation2] sm:$0xff]
    %v37 = vld [vmem:[#allocation5] sm:$0xf]
    %v39 = vrot.slane %v37, 4
    %vm41 = vcmask 1043456
    %v42 = vsel %vm41, %v37, %v39
    %v43 = vadd.f32 %v36, %v42
    %vm44 = vcmask 523264
    %45 = vst.msk [vmem:[#allocation7] sm:$0xff] %vm44, %v43
    // Predicated region
    $region18: #{tpu_custom_call.1} parent=1 // pred_check
      _
    $region19: #{tpu_custom_call.1} parent=1 // pred_check_branch
      %47 = sbr.rel (0) target = $region21
    $region20: #{tpu_custom_call.1} parent=1 // pred_region
      %s49 = ssub.s32 128, 128
      %50 = vsyncadd [#allocation4], %s49
      %s52 = sshll.u32 [#allocation7], 4
      %s53 = int_to_ptr.vmem [resolvable:$true] %s52
      %55 = dma.vmem_to_hbm [thread:$0]  %s53, 128, %s2, [#allocation4]
    $region21: #{tpu_custom_call.1} parent=1 // pred_fallthru
      _
    // Predicated region
    $region22: #{tpu_custom_call.1} parent=1 // pred_check
      _
    $region23: #{tpu_custom_call.1} parent=1 // pred_check_branch
      %57 = sbr.rel (0) target = $region25
    $region24: #{tpu_custom_call.1} parent=1 // pred_region
      %58 = dma.done [#allocation4], 128
    $region25: #{tpu_custom_call.1} parent=1 // pred_fallthru
      _
    %59 = vsyncpa [#allocation3], 1
    %60 = vsyncpa [#allocation6], 1
    %61 = vsyncpa [#allocation4], 1

</llo_original>
